<compile_context>
chip_gen: v5e
topology: v5e:2x2
jax: 0.10.0
libtpu: 0.0.40
codegen_flags: <defaults>
</compile_context>

<pallas_src>
import functools

import jax
import jax.numpy as jnp
from jax.experimental import pallas as pl
from jax.experimental.pallas import tpu as pltpu


_EPS = 1e-12  # matches torch.nn.functional.normalize default eps


def _round_up(x, m):
    return (x + m - 1) // m * m


def _info_nce_kernel(q_ref, nt_ref, posl_ref, loss_ref, l_sc,
                     *, inv_t, num_neg, block_m, mask_last):
    """One (N-tile, M-tile) grid step of the fused InfoNCE forward.

    q_ref   : (TN, D) bf16, L2-normalized query rows pre-scaled by 1/t.
    nt_ref  : (D, TM) bf16, L2-normalized negatives, transposed.
    posl_ref: (TN, 1) f32, positive logit / t (exact, computed in wrapper).
    loss_ref: (TN, 1) f32, per-row cross-entropy (written on last M tile).
    l_sc    : (TN, 1) f32 scratch, running sum of exp(logit/t - 1/t).
    """
    k = pl.program_id(1)
    k_last = pl.num_programs(1) - 1

    @pl.when(k == 0)
    def _init():
        # Fixed-shift LSE: logits/t <= 1/t for L2-normalized inputs, so the
        # constant shift 1/t can never overflow.  Fold the positive logit in.
        l_sc[...] = jnp.exp(posl_ref[...] - inv_t)

    # MXU: bf16 operands straight from HBM, f32 accumulation.
    # raw == negative logits / temperature for this tile.
    raw = jnp.dot(q_ref[...], nt_ref[...], preferred_element_type=jnp.float32)

    if mask_last:
        @pl.when(k < k_last)
        def _interior():  # unmasked fast path for interior tiles
            l_sc[...] += jnp.sum(jnp.exp(raw - inv_t), axis=-1, keepdims=True)

        @pl.when(k == k_last)
        def _edge():      # mask padded columns on the final partial tile only
            col = jax.lax.broadcasted_iota(jnp.int32, raw.shape, 1) + k * block_m
            shifted = jnp.where(col < num_neg, raw - inv_t, -jnp.inf)
            l_sc[...] += jnp.sum(jnp.exp(shifted), axis=-1, keepdims=True)
    else:
        l_sc[...] += jnp.sum(jnp.exp(raw - inv_t), axis=-1, keepdims=True)

    @pl.when(k == k_last)
    def _finalize():
        # lse(logits/t) - pos/t  with shift m = 1/t.
        loss_ref[...] = inv_t + jnp.log(l_sc[...]) - posl_ref[...]


def info_nce_pallas(query, positive_key, negative_keys, temperature=0.1,
                    *, block_n=1024, block_m=1024):
    """query: (N, D), positive_key: (N, D), negative_keys: (M, D).
    Returns (mean CE loss, mean positive logit, mean negative logit)."""
    assert query.ndim == 2 and positive_key.ndim == 2 and negative_keys.ndim == 2
    N, D = query.shape
    M = negative_keys.shape[0]
    assert positive_key.shape == (N, D)
    assert negative_keys.shape[1] == D

    inv_t = 1.0 / float(temperature)

    # ---- wrapper-side prep (O(N*D) + O(M*D), fused by XLA) -----------------
    q = query.astype(jnp.float32)
    p = positive_key.astype(jnp.float32)
    nk = negative_keys.astype(jnp.float32)

    inv_q = jax.lax.rsqrt(
        jnp.maximum(jnp.sum(q * q, axis=-1, keepdims=True), _EPS * _EPS))
    inv_p = jax.lax.rsqrt(
        jnp.maximum(jnp.sum(p * p, axis=-1, keepdims=True), _EPS * _EPS))
    inv_n = jax.lax.rsqrt(
        jnp.maximum(jnp.sum(nk * nk, axis=-1, keepdims=True), _EPS * _EPS))
    q_norm = q * inv_q                        # (N, D) f32
    p_norm = p * inv_p                        # (N, D) f32
    n_norm = nk * inv_n                       # (M, D) f32

    pos = jnp.sum(q_norm * p_norm, axis=-1, keepdims=True)   # (N, 1), exact f32
    pos_l = pos * inv_t                                       # logits / t
    pos_mean = jnp.mean(pos)
    # mean_ij (q_i . n_j) == (sum_i q_i) . (sum_j n_j) / (N*M)  (exact)
    neg_mean = jnp.dot(jnp.sum(q_norm, axis=0), jnp.sum(n_norm, axis=0)) / (N * M)

    # bf16 MXU operands: normalize + 1/t-scale + cast + transpose in one pass.
    q_hat = (q_norm * inv_t).astype(jnp.bfloat16)             # (N, D)
    nkT_hat = n_norm.astype(jnp.bfloat16).T                   # (D, M)

    # ---- tiling -------------------------------------------------------------
    TN = min(block_n, _round_up(N, 16))        # 16: bf16 sublane packing
    TM = min(block_m, _round_up(M, 128))
    Np = _round_up(N, TN)
    Mp = _round_up(M, TM)

    if Np != N:
        q_hat = jnp.pad(q_hat, ((0, Np - N), (0, 0)))
        pos_l = jnp.pad(pos_l, ((0, Np - N), (0, 0)))
    if Mp != M:
        nkT_hat = jnp.pad(nkT_hat, ((0, 0), (0, Mp - M)))

    grid = (Np // TN, Mp // TM)
    kernel = functools.partial(_info_nce_kernel, inv_t=inv_t, num_neg=M,
                               block_m=TM, mask_last=(Mp != M))

    flops = 2 * Np * Mp * D + 3 * Np * Mp
    transcendentals = Np * Mp + 2 * Np
    bytes_accessed = 2 * (Np * D + D * Mp * grid[0]) + 4 * 2 * Np

    loss_rows = pl.pallas_call(
        kernel,
        out_shape=jax.ShapeDtypeStruct((Np, 1), jnp.float32),
        grid_spec=pltpu.PrefetchScalarGridSpec(
            num_scalar_prefetch=0,
            grid=grid,
            in_specs=[
                pl.BlockSpec((TN, D), lambda i, k: (i, 0)),   # q_hat (k-invariant)
                pl.BlockSpec((D, TM), lambda i, k: (0, k)),   # negatives^T (bf16)
                pl.BlockSpec((TN, 1), lambda i, k: (i, 0)),   # pos logit / t
            ],
            out_specs=pl.BlockSpec((TN, 1), lambda i, k: (i, 0)),
            scratch_shapes=[pltpu.VMEM((TN, 1), jnp.float32)],  # running exp-sum
        ),
        compiler_params=pltpu.CompilerParams(
            dimension_semantics=("parallel", "arbitrary"),
            vmem_limit_bytes=48 * 1024 * 1024,   # fits v7x's 64 MiB/TC
        ),
        cost_estimate=pl.CostEstimate(flops=flops,
                                      transcendentals=transcendentals,
                                      bytes_accessed=bytes_accessed),
    )(q_hat, nkT_hat, pos_l)

    loss = jnp.mean(loss_rows[:N, 0])          # reduction='mean'
    return loss, pos_mean, neg_mean


def _info_nce_ref(query, positive_key, negative_keys, temperature=0.1):
    """Pure-JAX reference mirroring the PyTorch code path (unpaired, mean)."""
    def l2n(x):
        return x / jnp.maximum(jnp.linalg.norm(x, axis=-1, keepdims=True), _EPS)
    q, p, nk = l2n(query), l2n(positive_key), l2n(negative_keys)
    pos = jnp.sum(q * p, axis=1, keepdims=True)            # (N, 1)
    neg = q @ nk.T                                         # (N, M)
    logits = jnp.concatenate([pos, neg], axis=1) / temperature
    lse = jax.scipy.special.logsumexp(logits, axis=1)
    loss = jnp.mean(lse - logits[:, 0])
    return loss, jnp.mean(pos), jnp.mean(neg)


if __name__ == "__main__":
    # Shapes from the InfoNCE docstring example: batch=32, negatives=48, dim=128.
    N, M, D = 32, 48, 128
    kq, kp, kn = jax.random.split(jax.random.PRNGKey(0), 3)
    query = jax.random.normal(kq, (N, D), dtype=jnp.float32)
    positive_key = jax.random.normal(kp, (N, D), dtype=jnp.float32)
    negative_keys = jax.random.normal(kn, (M, D), dtype=jnp.float32)

    out = info_nce_pallas(query, positive_key, negative_keys, temperature=0.1)
    loss, pos_mean, neg_mean = jax.block_until_ready(out)

    ref = _info_nce_ref(query, positive_key, negative_keys, temperature=0.1)
    # bf16 MXU operands (f32 accumulate) on the negative logits -> relaxed
    # tolerance on the loss; the positive/negative means are exact f32.
    assert jnp.allclose(loss, ref[0], atol=2e-2, rtol=1e-2), (loss, ref[0])
    assert jnp.allclose(pos_mean, ref[1], atol=1e-5, rtol=1e-5), (pos_mean, ref[1])
    assert jnp.allclose(neg_mean, ref[2], atol=1e-5, rtol=1e-5), (neg_mean, ref[2])

    # Larger, non-aligned shapes exercising the tiled path: 2 query tiles
    # (padded rows) x 3 negative tiles (padded-column mask on the edge tile).
    N2, M2, D2 = 384, 2304, 256
    kq2, kp2, kn2 = jax.random.split(jax.random.PRNGKey(1), 3)
    q2 = jax.random.normal(kq2, (N2, D2), dtype=jnp.float32)
    p2 = jax.random.normal(kp2, (N2, D2), dtype=jnp.float32)
    n2 = jax.random.normal(kn2, (M2, D2), dtype=jnp.float32)
    out2 = jax.block_until_ready(
        info_nce_pallas(q2, p2, n2, temperature=0.1, block_n=256, block_m=1024))
    ref2 = _info_nce_ref(q2, p2, n2, temperature=0.1)
    assert jnp.allclose(out2[0], ref2[0], atol=2e-2, rtol=1e-2), (out2[0], ref2[0])
    assert jnp.allclose(out2[1], ref2[1], atol=1e-5, rtol=1e-5), (out2[1], ref2[1])
    assert jnp.allclose(out2[2], ref2[2], atol=1e-5, rtol=1e-5), (out2[2], ref2[2])

    print("KERNEL_OK")
</pallas_src>

<mosaic_0001>
module attributes {stable_mosaic.version = 11 : i64} {
  func.func @_info_nce_kernel(%arg0: i32, %arg1: i32, %arg2: memref<32x128xbf16, #tpu.memory_space<vmem>>, %arg3: memref<128x128xbf16, #tpu.memory_space<vmem>>, %arg4: memref<32x1xf32, #tpu.memory_space<vmem>>, %arg5: memref<32x1xf32, #tpu.memory_space<vmem>>, %arg6: memref<32x1xf32, #tpu.memory_space<vmem>>) attributes {dimension_semantics = [#tpu.dimension_semantics<parallel>, #tpu.dimension_semantics<arbitrary>], iteration_bounds = array<i64: 1, 1>, scalar_prefetch = 0 : i64, scratch_operands = 1 : i64, tpu.core_type = #tpu.core_type<tc>, window_params = [{transform_indices = @transform_0, window_bounds = array<i64: 32, 128>}, {transform_indices = @transform_1, window_bounds = array<i64: 128, 128>}, {transform_indices = @transform_2, window_bounds = array<i64: 32, 1>}, {transform_indices = @transform_3, window_bounds = array<i64: 32, 1>}]} {
    %c0_i32 = arith.constant 0 : i32
    %0 = arith.cmpi eq, %arg1, %c0_i32 : i32
    %1 = arith.extui %0 : i1 to i32
    %c0_i32_0 = arith.constant 0 : i32
    %2 = arith.cmpi ne, %1, %c0_i32_0 : i32
    scf.if %2 {
      %c0_10 = arith.constant 0 : index
      %c0_11 = arith.constant 0 : index
      %15 = vector.load %arg4[%c0_10, %c0_11] : memref<32x1xf32, #tpu.memory_space<vmem>>, vector<32x1xf32>
      %cst_12 = arith.constant 1.000000e+01 : f32
      %16 = vector.broadcast %cst_12 : f32 to vector<32x1xf32>
      %17 = arith.subf %15, %16 : vector<32x1xf32>
      %18 = math.exp %17 : vector<32x1xf32>
      %c0_13 = arith.constant 0 : index
      %c0_14 = arith.constant 0 : index
      %19 = vector.load %arg6[%c0_13, %c0_14] : memref<32x1xf32, #tpu.memory_space<vmem>>, vector<32x1xf32>
      tpu.vector_store %arg6[%c0_13, %c0_14], %18 {strides = array<i32>} : memref<32x1xf32, #tpu.memory_space<vmem>>, vector<32x1xf32>,
    } else {
    }
    %c0 = arith.constant 0 : index
    %c0_1 = arith.constant 0 : index
    %3 = vector.load %arg2[%c0, %c0_1] : memref<32x128xbf16, #tpu.memory_space<vmem>>, vector<32x128xbf16>
    %c0_2 = arith.constant 0 : index
    %c0_3 = arith.constant 0 : index
    %4 = vector.load %arg3[%c0_2, %c0_3] : memref<128x128xbf16, #tpu.memory_space<vmem>>, vector<128x128xbf16>
    %cst = arith.constant dense<0.000000e+00> : vector<32x128xf32>
    %5 = tpu.matmul %3, %4, %cst {dimension_numbers = #tpu.dot_dimension_numbers<[1], [0], [0], [1], [0, 0, 1, 1], [], []>} : vector<32x128xbf16>, vector<128x128xbf16>, vector<32x128xf32> -> vector<32x128xf32>
    %c0_i32_4 = arith.constant 0 : i32
    %6 = arith.cmpi slt, %arg1, %c0_i32_4 : i32
    %7 = arith.extui %6 : i1 to i32
    %c0_i32_5 = arith.constant 0 : i32
    %8 = arith.cmpi ne, %7, %c0_i32_5 : i32
    scf.if %8 {
      %c0_10 = arith.constant 0 : index
      %c0_11 = arith.constant 0 : index
      %15 = vector.load %arg6[%c0_10, %c0_11] : memref<32x1xf32, #tpu.memory_space<vmem>>, vector<32x1xf32>
      %cst_12 = arith.constant 1.000000e+01 : f32
      %16 = vector.broadcast %cst_12 : f32 to vector<32x128xf32>
      %17 = arith.subf %5, %16 : vector<32x128xf32>
      %18 = math.exp %17 : vector<32x128xf32>
      %cst_13 = arith.constant dense<0.000000e+00> : vector<32xf32>
      %19 = vector.multi_reduction <add>, %18, %cst_13 [1] : vector<32x128xf32> to vector<32xf32>
      %20 = vector.shape_cast %19 : vector<32xf32> to vector<32x1xf32>
      %21 = arith.addf %15, %20 : vector<32x1xf32>
      %c0_14 = arith.constant 0 : index
      %c0_15 = arith.constant 0 : index
      %22 = vector.load %arg6[%c0_14, %c0_15] : memref<32x1xf32, #tpu.memory_space<vmem>>, vector<32x1xf32>
      tpu.vector_store %arg6[%c0_14, %c0_15], %21 {strides = array<i32>} : memref<32x1xf32, #tpu.memory_space<vmem>>, vector<32x1xf32>,
    } else {
    }
    %c0_i32_6 = arith.constant 0 : i32
    %9 = arith.cmpi eq, %arg1, %c0_i32_6 : i32
    %10 = arith.extui %9 : i1 to i32
    %c0_i32_7 = arith.constant 0 : i32
    %11 = arith.cmpi ne, %10, %c0_i32_7 : i32
    scf.if %11 {
      %15 = tpu.iota {dimensions = array<i32: 1>} : vector<32x128xi32>
      %c128_i32 = arith.constant 128 : i32
      %16 = arith.muli %arg1, %c128_i32 : i32
      %17 = vector.broadcast %16 : i32 to vector<32x128xi32>
      %18 = arith.addi %15, %17 : vector<32x128xi32>
      %c48_i32 = arith.constant 48 : i32
      %19 = vector.broadcast %c48_i32 : i32 to vector<32x128xi32>
      %20 = arith.cmpi slt, %18, %19 : vector<32x128xi32>
      %cst_10 = arith.constant 1.000000e+01 : f32
      %21 = vector.broadcast %cst_10 : f32 to vector<32x128xf32>
      %22 = arith.subf %5, %21 : vector<32x128xf32>
      %cst_11 = arith.constant 0xFF800000 : f32
      %23 = vector.broadcast %cst_11 : f32 to vector<32x128xf32>
      %24 = arith.select %20, %22, %23 : vector<32x128xi1>, vector<32x128xf32>
      %c0_12 = arith.constant 0 : index
      %c0_13 = arith.constant 0 : index
      %25 = vector.load %arg6[%c0_12, %c0_13] : memref<32x1xf32, #tpu.memory_space<vmem>>, vector<32x1xf32>
      %26 = math.exp %24 : vector<32x128xf32>
      %cst_14 = arith.constant dense<0.000000e+00> : vector<32xf32>
      %27 = vector.multi_reduction <add>, %26, %cst_14 [1] : vector<32x128xf32> to vector<32xf32>
      %28 = vector.shape_cast %27 : vector<32xf32> to vector<32x1xf32>
      %29 = arith.addf %25, %28 : vector<32x1xf32>
      %c0_15 = arith.constant 0 : index
      %c0_16 = arith.constant 0 : index
      %30 = vector.load %arg6[%c0_15, %c0_16] : memref<32x1xf32, #tpu.memory_space<vmem>>, vector<32x1xf32>
      tpu.vector_store %arg6[%c0_15, %c0_16], %29 {strides = array<i32>} : memref<32x1xf32, #tpu.memory_space<vmem>>, vector<32x1xf32>,
    } else {
    }
    %c0_i32_8 = arith.constant 0 : i32
    %12 = arith.cmpi eq, %arg1, %c0_i32_8 : i32
    %13 = arith.extui %12 : i1 to i32
    %c0_i32_9 = arith.constant 0 : i32
    %14 = arith.cmpi ne, %13, %c0_i32_9 : i32
    scf.if %14 {
      %c0_10 = arith.constant 0 : index
      %c0_11 = arith.constant 0 : index
      %15 = vector.load %arg6[%c0_10, %c0_11] : memref<32x1xf32, #tpu.memory_space<vmem>>, vector<32x1xf32>
      %16 = math.log %15 : vector<32x1xf32>
      %cst_12 = arith.constant 1.000000e+01 : f32
      %17 = vector.broadcast %cst_12 : f32 to vector<32x1xf32>
      %18 = arith.addf %17, %16 : vector<32x1xf32>
      %c0_13 = arith.constant 0 : index
      %c0_14 = arith.constant 0 : index
      %19 = vector.load %arg4[%c0_13, %c0_14] : memref<32x1xf32, #tpu.memory_space<vmem>>, vector<32x1xf32>
      %20 = arith.subf %18, %19 : vector<32x1xf32>
      %c0_15 = arith.constant 0 : index
      %c0_16 = arith.constant 0 : index
      %21 = vector.load %arg5[%c0_15, %c0_16] : memref<32x1xf32, #tpu.memory_space<vmem>>, vector<32x1xf32>
      tpu.vector_store %arg5[%c0_15, %c0_16], %20 {strides = array<i32>} : memref<32x1xf32, #tpu.memory_space<vmem>>, vector<32x1xf32>,
    } else {
    }
    return
  }
  func.func @transform_0(%arg0: i32, %arg1: i32) -> (i32, i32) {
    %c0_i32 = arith.constant 0 : i32
    %c0_i32_0 = arith.constant 0 : i32
    return %arg0, %c0_i32 : i32, i32
  }
  func.func @transform_1(%arg0: i32, %arg1: i32) -> (i32, i32) {
    %c0_i32 = arith.constant 0 : i32
    %c0_i32_0 = arith.constant 0 : i32
    return %c0_i32, %arg1 : i32, i32
  }
  func.func @transform_2(%arg0: i32, %arg1: i32) -> (i32, i32) {
    %c0_i32 = arith.constant 0 : i32
    %c0_i32_0 = arith.constant 0 : i32
    return %arg0, %c0_i32 : i32, i32
  }
  func.func @transform_3(%arg0: i32, %arg1: i32) -> (i32, i32) {
    %c0_i32 = arith.constant 0 : i32
    %c0_i32_0 = arith.constant 0 : i32
    return %arg0, %c0_i32 : i32, i32
  }
}

</mosaic_0001>

<llo_original>
// kernel: tpu_custom_call.1
$region0: #{tpu_custom_call.1}
  #allocation0 [shape = 'u32[]', space=smem, size = 0x4, offset = 0x4, fixed_abs, tag = 'smem constant byte address 0x4 - core index']
  #allocation1 [shape = 'u32[72,128]{1,0:T(1,128)}', space=vmem, size = 0x9000, scoped, tag = 'internal scratch']
  #allocation2 [shape = 'f32[32,1]{1,0:T(8,128)}', space=vmem, size = 0x4000, scoped, tag = 'scratch operand']
  %s0 = inlined_call_operand.vmem [shape: bf16[32,128], index: 0, kind: input, shape index: {}]
  %s1 = inlined_call_operand.hbm [shape: bf16[128,128], index: 1, kind: input, shape index: {}]
  %s2 = inlined_call_operand.vmem [shape: f32[32,1], index: 2, kind: input, shape index: {}]
  %s3 = inlined_call_operand.vmem [shape: f32[32,1], index: 3, kind: output, shape index: {}]
  %s4 = sld [smem:[#allocation0]]
  $region38: #{tpu_custom_call.1} parent=0
    _
  %s6 = ssub.s32 1, %s4
  %s7 = scalar_select 0, %s6, %s4
  $region1: #{tpu_custom_call.1} parent=0
    #allocation3 [shape = 'u8[32768]{0}', space=vmem, size = 0x8000, scoped, tag = 'input window, operand 1, single buffered']
    #allocation4 [shape = 's32[1]{0}', space=sflag, size = 0x4, scoped, tag = 'scoped memory for tpu_custom_call.1']
    %8 = vsyncpa [#allocation4], 0
    // Predicated region
    $region2: #{tpu_custom_call.1} parent=1 // pred_check
      _
    $region3: #{tpu_custom_call.1} parent=1 // pred_check_branch
      %10 = sbr.rel (0) target = $region5
    $region4: #{tpu_custom_call.1} parent=1 // pred_region
      _
    $region5: #{tpu_custom_call.1} parent=1 // pred_fallthru
      _
    // Predicated region
    $region6: #{tpu_custom_call.1} parent=1 // pred_check
      _
    $region7: #{tpu_custom_call.1} parent=1 // pred_check_branch
      %12 = sbr.rel (0) target = $region9
    $region8: #{tpu_custom_call.1} parent=1 // pred_region
      %14 = vsyncadd [#allocation4], 0
      %s15 = sshll.u32 %s1, 4
      %s16 = int_to_ptr.hbm [resolvable:$true] %s15
      %s17 = sshll.u32 [#allocation3], 4
      %s18 = int_to_ptr.vmem [resolvable:$true] %s17
      %23 = dma.hbm_to_vmem [thread:$0]  %s16, 1024, %s18, [#allocation4], 64, 64, 4
    $region9: #{tpu_custom_call.1} parent=1 // pred_fallthru
      _
    // Predicated region
    $region10: #{tpu_custom_call.1} parent=1 // pred_check
      _
    $region11: #{tpu_custom_call.1} parent=1 // pred_check_branch
      %25 = sbr.rel (0) target = $region13
    $region12: #{tpu_custom_call.1} parent=1 // pred_region
      _
    $region13: #{tpu_custom_call.1} parent=1 // pred_fallthru
      _
    // Predicated region
    $region14: #{tpu_custom_call.1} parent=1 // pred_check
      _
    $region15: #{tpu_custom_call.1} parent=1 // pred_check_branch
      %27 = sbr.rel (0) target = $region17
    $region16: #{tpu_custom_call.1} parent=1 // pred_region
      %29 = dma.done [#allocation4], 1024
    $region17: #{tpu_custom_call.1} parent=1 // pred_fallthru
      _
    %p30 = scmp.eq.s32.totalorder 0, 0
    // Predicated region
    $region18: #{tpu_custom_call.1} parent=1 // pred_check
      %p31 = pneg %p30
    $region19: #{tpu_custom_call.1} parent=1 // pred_check_branch
      %33 = sbr.rel (%p31) target = $region21
    $region20: #{tpu_custom_call.1} parent=1 // pred_region
      %v34 = vld [vmem:[%s2] sm:$0xff]
      %v35 = vld [vmem:[%s2 + $0x8] sm:$0xff]
      %v36 = vld [vmem:[%s2 + $0x10] sm:$0xff]
      %v37 = vld [vmem:[%s2 + $0x18] sm:$0xff]
      %v38 = vsub.f32 %v34, 10.0
      %v39 = vsub.f32 %v35, 10.0
      %v40 = vsub.f32 %v36, 10.0
      %v41 = vsub.f32 %v37, 10.0
      %v42 = vmul.f32 %v38, 1.442695
      %v43 = vpow.pop %v42
      %v44 = vmul.f32 %v39, 1.442695
      %v45 = vpow.pop %v44
      %v46 = vmul.f32 %v40, 1.442695
      %v47 = vpow.pop %v46
      %v48 = vmul.f32 %v41, 1.442695
      %v49 = vpow.pop %v48
      %vm50 = vcmask 7168
      %51 = vst.msk [vmem:[#allocation2] sm:$0xff] %vm50, %v43
      %52 = vst.msk [vmem:[#allocation2 + $0x8] sm:$0xff] %vm50, %v45
      %53 = vst.msk [vmem:[#allocation2 + $0x10] sm:$0xff] %vm50, %v47
      %54 = vst.msk [vmem:[#allocation2 + $0x18] sm:$0xff] %vm50, %v49
    $region21: #{tpu_custom_call.1} parent=1 // pred_fallthru
      _
    %v55 = vld [vmem:[%s0] sm:$0xf]
    %v56 = vld [vmem:[%s0 + $0x4] sm:$0xf]
    %v57 = vld [vmem:[%s0 + $0x8] sm:$0xf]
    %v58 = vld [vmem:[%s0 + $0xc] sm:$0xf]
    %v59 = vld [vmem:[#allocation3] sm:$0xf]
    %v60 = vld [vmem:[#allocation3 + $0x4] sm:$0xf]
    %v61 = vld [vmem:[#allocation3 + $0x8] sm:$0xf]
    %v62 = vld [vmem:[#allocation3 + $0xc] sm:$0xf]
    %v63 = vld [vmem:[#allocation3 + $0x10] sm:$0xf]
    %v64 = vld [vmem:[#allocation3 + $0x14] sm:$0xf]
    %v65 = vld [vmem:[#allocation3 + $0x18] sm:$0xf]
    %v66 = vld [vmem:[#allocation3 + $0x1c] sm:$0xf]
    %v67 = vld [vmem:[#allocation3 + $0x20] sm:$0xf]
    %v68 = vld [vmem:[#allocation3 + $0x24] sm:$0xf]
    %v69 = vld [vmem:[#allocation3 + $0x28] sm:$0xf]
    %v70 = vld [vmem:[#allocation3 + $0x2c] sm:$0xf]
    %v71 = vld [vmem:[#allocation3 + $0x30] sm:$0xf]
    %v72 = vld [vmem:[#allocation3 + $0x34] sm:$0xf]
    %v73 = vld [vmem:[#allocation3 + $0x38] sm:$0xf]
    %v74 = vld [vmem:[#allocation3 + $0x3c] sm:$0xf]
    %v79 = vunpack.c.l.b16 %v55
    %v80 = vunpack.c.l.b16 %v56
    %v81 = vunpack.c.l.b16 %v57
    %v82 = vunpack.c.l.b16 %v58
    %v83 = vpack.c.b16 %v80, %v79
    %v84 = vpack.c.b16 %v82, %v81
    %v103 = vunpack.c.l.b16 %v59
    %v104 = vunpack.c.l.b16 %v60
    %v105 = vunpack.c.l.b16 %v61
    %v106 = vunpack.c.l.b16 %v62
    %v107 = vunpack.c.l.b16 %v63
    %v108 = vunpack.c.l.b16 %v64
    %v109 = vunpack.c.l.b16 %v65
    %v110 = vunpack.c.l.b16 %v66
    %v111 = vunpack.c.l.b16 %v67
    %v112 = vunpack.c.l.b16 %v68
    %v113 = vunpack.c.l.b16 %v69
    %v114 = vunpack.c.l.b16 %v70
    %v115 = vunpack.c.l.b16 %v71
    %v116 = vunpack.c.l.b16 %v72
    %v117 = vunpack.c.l.b16 %v73
    %v118 = vunpack.c.l.b16 %v74
    %v119 = vpack.c.b16 %v104, %v103
    %v120 = vpack.c.b16 %v106, %v105
    %v121 = vpack.c.b16 %v108, %v107
    %v122 = vpack.c.b16 %v110, %v109
    %v123 = vpack.c.b16 %v112, %v111
    %v124 = vpack.c.b16 %v114, %v113
    %v125 = vpack.c.b16 %v116, %v115
    %v126 = vpack.c.b16 %v118, %v117
    %135 = vmatpush.bf16.msra.mxu0 %v126
    %136 = vmatpush.bf16.msra.mxu0 %v125
    %137 = vmatpush.bf16.msra.mxu0 %v124
    %138 = vmatpush.bf16.msra.mxu0 %v123
    %139 = vmatpush.bf16.msra.mxu0 %v122
    %140 = vmatpush.bf16.msra.mxu0 %v121
    %141 = vmatpush.bf16.msra.mxu0 %v120
    %142 = vmatpush.bf16.msra.mxu0 %v119
    %143 = vmatmul.bf16.gmra.mxu0 %v83
    %v144 = vpop.f32.mrf.mxu0
    %v145 = vadd.f32 0.0, %v144
    %v146 = vpop.f32.mrf.mxu0
    %v147 = vadd.f32 0.0, %v146
    %148 = vmatmul.bf16.gmra.mxu0 %v84
    %v149 = vpop.f32.mrf.mxu0
    %v150 = vadd.f32 0.0, %v149
    %v151 = vpop.f32.mrf.mxu0
    %v152 = vadd.f32 0.0, %v151
    %153 = vdwg.mxu0
    %p154 = scmp.lt.s32.totalorder 0, 0
    // Predicated region
    $region22: #{tpu_custom_call.1} parent=1 // pred_check
      %p155 = pneg %p154
    $region23: #{tpu_custom_call.1} parent=1 // pred_check_branch
      %157 = sbr.rel (%p155) target = $region25
    $region24: #{tpu_custom_call.1} parent=1 // pred_region
      %v158 = vld [vmem:[#allocation2] sm:$0xff]
      %v159 = vld [vmem:[#allocation2 + $0x8] sm:$0xff]
      %v160 = vld [vmem:[#allocation2 + $0x10] sm:$0xff]
      %v161 = vld [vmem:[#allocation2 + $0x18] sm:$0xff]
      %v162 = vsub.f32 %v145, 10.0
      %v163 = vsub.f32 %v147, 10.0
      %v164 = vsub.f32 %v150, 10.0
      %v165 = vsub.f32 %v152, 10.0
      %v166 = vmul.f32 %v162, 1.442695
      %v167 = vpow.pop %v166
      %v168 = vmul.f32 %v163, 1.442695
      %v169 = vpow.pop %v168
      %v170 = vmul.f32 %v164, 1.442695
      %v171 = vpow.pop %v170
      %v172 = vmul.f32 %v165, 1.442695
      %v173 = vpow.pop %v172
      %174 = vadd.xlane.f32.xlu0 %v167
      %v175 = vpop.xlane.xlu0 %174
      %176 = vadd.xlane.f32.xlu0 %v169
      %v177 = vpop.xlane.xlu0 %176
      %178 = vadd.xlane.f32.xlu0 %v171
      %v179 = vpop.xlane.xlu0 %178
      %180 = vadd.xlane.f32.xlu0 %v173
      %v181 = vpop.xlane.xlu0 %180
      %v182 = vadd.f32 %v158, %v175
      %v183 = vadd.f32 %v159, %v177
      %v184 = vadd.f32 %v160, %v179
      %v185 = vadd.f32 %v161, %v181
      %vm186 = vcmask 7168
      %187 = vst.msk [vmem:[#allocation2] sm:$0xff] %vm186, %v182
      %188 = vst.msk [vmem:[#allocation2 + $0x8] sm:$0xff] %vm186, %v183
      %189 = vst.msk [vmem:[#allocation2 + $0x10] sm:$0xff] %vm186, %v184
      %190 = vst.msk [vmem:[#allocation2 + $0x18] sm:$0xff] %vm186, %v185
    $region25: #{tpu_custom_call.1} parent=1 // pred_fallthru
      _
    // Predicated region
    $region26: #{tpu_custom_call.1} parent=1 // pred_check
      %p191 = pneg %p30
    $region27: #{tpu_custom_call.1} parent=1 // pred_check_branch
      %193 = sbr.rel (%p191) target = $region29
    $region28: #{tpu_custom_call.1} parent=1 // pred_region
      %v194 = vlaneseq
      %v195 = vand.u32 %v194, 127
      %s196 = smul.u32 0, 128
      %v197 = vstv %s196
      %v198 = vadd.s32 %v195, %v197
      %vm199 = vcmp.lt.s32.totalorder %v198, 48
      %v200 = vsub.f32 %v145, 10.0
      %v201 = vsub.f32 %v147, 10.0
      %v202 = vsub.f32 %v150, 10.0
      %v203 = vsub.f32 %v152, 10.0
      %v204 = vsel %vm199, %v200, -inf
      %v205 = vsel %vm199, %v201, -inf
      %v206 = vsel %vm199, %v202, -inf
      %v207 = vsel %vm199, %v203, -inf
      %v208 = vld [vmem:[#allocation2] sm:$0xff]
      %v209 = vld [vmem:[#allocation2 + $0x8] sm:$0xff]
      %v210 = vld [vmem:[#allocation2 + $0x10] sm:$0xff]
      %v211 = vld [vmem:[#allocation2 + $0x18] sm:$0xff]
      %v212 = vmul.f32 %v204, 1.442695
      %v213 = vpow.pop %v212
      %v214 = vmul.f32 %v205, 1.442695
      %v215 = vpow.pop %v214
      %v216 = vmul.f32 %v206, 1.442695
      %v217 = vpow.pop %v216
      %v218 = vmul.f32 %v207, 1.442695
      %v219 = vpow.pop %v218
      %220 = vadd.xlane.f32.xlu0 %v213
      %v221 = vpop.xlane.xlu0 %220
      %222 = vadd.xlane.f32.xlu0 %v215
      %v223 = vpop.xlane.xlu0 %222
      %224 = vadd.xlane.f32.xlu0 %v217
      %v225 = vpop.xlane.xlu0 %224
      %226 = vadd.xlane.f32.xlu0 %v219
      %v227 = vpop.xlane.xlu0 %226
      %v228 = vadd.f32 %v208, %v221
      %v229 = vadd.f32 %v209, %v223
      %v230 = vadd.f32 %v210, %v225
      %v231 = vadd.f32 %v211, %v227
      %vm232 = vcmask 7168
      %233 = vst.msk [vmem:[#allocation2] sm:$0xff] %vm232, %v228
      %234 = vst.msk [vmem:[#allocation2 + $0x8] sm:$0xff] %vm232, %v229
      %235 = vst.msk [vmem:[#allocation2 + $0x10] sm:$0xff] %vm232, %v230
      %236 = vst.msk [vmem:[#allocation2 + $0x18] sm:$0xff] %vm232, %v231
      %v237 = vld [vmem:[#allocation2] sm:$0xff]
      %v238 = vld [vmem:[#allocation2 + $0x8] sm:$0xff]
      %v239 = vld [vmem:[#allocation2 + $0x10] sm:$0xff]
      %v240 = vld [vmem:[#allocation2 + $0x18] sm:$0xff]
      %v241 = vlog2.pop %v237
      %v242 = vmul.f32 %v241, 0.6931472
      %v243 = vlog2.pop %v238
      %v244 = vmul.f32 %v243, 0.6931472
      %v245 = vlog2.pop %v239
      %v246 = vmul.f32 %v245, 0.6931472
      %v247 = vlog2.pop %v240
      %v248 = vmul.f32 %v247, 0.6931472
      %v249 = vadd.f32 %v242, 10.0
      %v250 = vadd.f32 %v244, 10.0
      %v251 = vadd.f32 %v246, 10.0
      %v252 = vadd.f32 %v248, 10.0
      %v253 = vld [vmem:[%s2] sm:$0xff]
      %v254 = vld [vmem:[%s2 + $0x8] sm:$0xff]
      %v255 = vld [vmem:[%s2 + $0x10] sm:$0xff]
      %v256 = vld [vmem:[%s2 + $0x18] sm:$0xff]
      %v257 = vsub.f32 %v249, %v253
      %v258 = vsub.f32 %v250, %v254
      %v259 = vsub.f32 %v251, %v255
      %v260 = vsub.f32 %v252, %v256
      %261 = vst.msk [vmem:[%s3] sm:$0xff] %vm232, %v257
      %262 = vst.msk [vmem:[%s3 + $0x8] sm:$0xff] %vm232, %v258
      %263 = vst.msk [vmem:[%s3 + $0x10] sm:$0xff] %vm232, %v259
      %264 = vst.msk [vmem:[%s3 + $0x18] sm:$0xff] %vm232, %v260
    $region29: #{tpu_custom_call.1} parent=1 // pred_fallthru
      _
    // Predicated region
    $region30: #{tpu_custom_call.1} parent=1 // pred_check
      _
    $region31: #{tpu_custom_call.1} parent=1 // pred_check_branch
      %266 = sbr.rel (0) target = $region33
    $region32: #{tpu_custom_call.1} parent=1 // pred_region
      _
    $region33: #{tpu_custom_call.1} parent=1 // pred_fallthru
      _
    // Predicated region
    $region34: #{tpu_custom_call.1} parent=1 // pred_check
      _
    $region35: #{tpu_custom_call.1} parent=1 // pred_check_branch
      %268 = sbr.rel (0) target = $region37
    $region36: #{tpu_custom_call.1} parent=1 // pred_region
      _
    $region37: #{tpu_custom_call.1} parent=1 // pred_fallthru
      _
    %269 = vsyncpa [#allocation4], 1

</llo_original>
